<compile_context>
chip_gen: v7x
topology: tpu7x:2x2x1
jax: 0.10.0
libtpu: 0.0.40
codegen_flags: <defaults>
</compile_context>

<pallas_src>
import functools

import jax
import jax.numpy as jnp
from jax.experimental import pallas as pl
from jax.experimental.pallas import tpu as pltpu

_LN_EPS = 1e-5  # nn.LayerNorm default eps


def _round_up(n, m):
    return ((n + m - 1) // m) * m


def _make_kernel(hidden_true, out_true, has_proj):
    """Fused fc1 -> LN1 -> relu -> fc2 (+ residual) -> LN2 -> relu kernel."""
    inv_h = 1.0 / float(hidden_true)
    inv_o = 1.0 / float(out_true)

    def kernel(*refs):
        if has_proj:
            x_ref, w1_ref, p1_ref, w2_ref, p2_ref, wu_ref, o_ref = refs
        else:
            x_ref, w1_ref, p1_ref, w2_ref, p2_ref, o_ref = refs

        x = x_ref[...]                                   # bf16 (tm, D_in_pad)

        # ---- fc1 + LN1 + relu ------------------------------------------------
        # Padded lanes of h are exactly 0 (zero-padded w1 columns / b1), so the
        # true-width divisor + sum-of-squares variance needs no iota/mask.
        h = jnp.dot(x, w1_ref[...], preferred_element_type=jnp.float32)
        h = h + p1_ref[0:1, :]                           # b1
        mean1 = jnp.sum(h, axis=-1, keepdims=True) * inv_h
        var1 = jnp.sum(h * h, axis=-1, keepdims=True) * inv_h - mean1 * mean1
        h = (h - mean1) * jax.lax.rsqrt(var1 + _LN_EPS)
        h = jnp.maximum(h * p1_ref[1:2, :] + p1_ref[2:3, :], 0.0)  # padded lanes -> 0

        # ---- fc2 (+ residual): single f32 accumulator, fused bias -------------
        y = jnp.dot(h.astype(jnp.bfloat16), w2_ref[...],
                    preferred_element_type=jnp.float32)
        if has_proj:
            y = y + jnp.dot(x, wu_ref[...], preferred_element_type=jnp.float32)
        else:
            y = y + x_ref[...].astype(jnp.float32)       # identity residual (re-read)
        y = y + p2_ref[0:1, :]                           # b2 (+ bu when has_proj)

        # ---- LN2 + relu ---------------------------------------------------------
        mean2 = jnp.sum(y, axis=-1, keepdims=True) * inv_o
        var2 = jnp.sum(y * y, axis=-1, keepdims=True) * inv_o - mean2 * mean2
        y = (y - mean2) * jax.lax.rsqrt(var2 + _LN_EPS)
        y = jnp.maximum(y * p2_ref[1:2, :] + p2_ref[2:3, :], 0.0)
        o_ref[...] = y.astype(o_ref.dtype)

    return kernel


def init_params(key, input_units=512, output_units=None):
    """Init matching layerer_residual_block.__init__.

    Weights are stored (in, out), bf16, zero-padded so D_in / hidden / D_out are
    multiples of 128. Per-feature params are packed:
      ln1p = [b1; gamma1; beta1]           (3, H_pad)
      ln2p = [b2 (+ bu); gamma2; beta2]    (3, D_out_pad)
    Returns (params, hidden_true, output_units).
    """
    if not output_units:
        output_units = input_units
    assert output_units >= 2, "output_units // 2 must be >= 1"
    hidden = output_units // 2

    d_in_pad = _round_up(input_units, 128)
    h_pad = _round_up(hidden, 128)
    d_out_pad = _round_up(output_units, 128)

    def linear(k, fan_in, fan_out, pad_in, pad_out):
        kw, kb = jax.random.split(k)
        bound = fan_in ** -0.5
        w = jax.random.uniform(kw, (fan_in, fan_out), jnp.float32, -bound, bound)
        b = jax.random.uniform(kb, (fan_out,), jnp.float32, -bound, bound)
        w = jnp.pad(w, ((0, pad_in - fan_in), (0, pad_out - fan_out)))
        b = jnp.pad(b, (0, pad_out - fan_out))
        return w, b

    k1, k2, k3 = jax.random.split(key, 3)
    w1, b1 = linear(k1, input_units, hidden, d_in_pad, h_pad)
    w2, b2 = linear(k2, hidden, output_units, h_pad, d_out_pad)

    g1 = jnp.pad(jnp.ones((hidden,), jnp.float32), (0, h_pad - hidden))
    be1 = jnp.zeros((h_pad,), jnp.float32)
    g2 = jnp.pad(jnp.ones((output_units,), jnp.float32), (0, d_out_pad - output_units))
    be2 = jnp.zeros((d_out_pad,), jnp.float32)

    params = {
        "w1": w1.astype(jnp.bfloat16),
        "w2": w2.astype(jnp.bfloat16),
        "ln1p": jnp.stack([b1, g1, be1], axis=0),        # (3, H_pad)
    }
    bias2 = b2
    if output_units != input_units:
        wu, bu = linear(k3, input_units, output_units, d_in_pad, d_out_pad)
        params["wu"] = wu.astype(jnp.bfloat16)
        bias2 = b2 + bu                                   # fused fc2 + updownsample bias
    params["ln2p"] = jnp.stack([bias2, g2, be2], axis=0)  # (3, D_out_pad)
    return params, hidden, output_units


@functools.partial(jax.jit, static_argnames=("hidden_true", "out_units", "tile_m"))
def residual_block(x, params, *, hidden_true, out_units, tile_m=256):
    """Pallas forward of layerer_residual_block. x: (B, input_units) float32/bf16."""
    B, d_in = x.shape
    d_in_pad, h_pad = params["w1"].shape
    d_out_pad = params["w2"].shape[1]
    has_proj = "wu" in params

    # Batch tile: multiple of 8 sublanes, <= tile_m; keep >= 2 grid steps when
    # B allows so v7x's two TensorCores are both used under "parallel".
    tm = min(tile_m, _round_up(B, 8))
    tm = max(8, (tm // 8) * 8)
    while tm > 8 and _round_up(B, tm) // tm < 2:
        tm = max(8, _round_up(tm // 2, 8))
    B_pad = _round_up(B, tm)

    # Stream x as bf16 (half the HBM traffic); zero-pad batch and feature lanes.
    x = x.astype(jnp.bfloat16)
    if B_pad != B or d_in_pad != d_in:
        x = jnp.pad(x, ((0, B_pad - B), (0, d_in_pad - d_in)))

    inputs = [x, params["w1"], params["ln1p"], params["w2"], params["ln2p"]]
    if has_proj:
        inputs.append(params["wu"])

    def _resident_spec(shape):
        # Constant-index blocks: fetched once, single-buffered (no double-buffer
        # VMEM cost). Fall back gracefully if pipeline_mode is unavailable.
        try:
            return pl.BlockSpec(shape, lambda i: (0, 0),
                                pipeline_mode=pl.Buffered(1))
        except (TypeError, AttributeError):
            return pl.BlockSpec(shape, lambda i: (0, 0))

    in_specs = [pl.BlockSpec((tm, d_in_pad), lambda i: (i, 0))]
    in_specs += [_resident_spec(a.shape) for a in inputs[1:]]
    out_spec = pl.BlockSpec((tm, d_out_pad), lambda i: (i, 0))

    # VMEM budget: single-buffered weights + double-buffered x/out tiles + f32
    # LN/matmul intermediates (headroom). Cap below physical VMEM; note v7x has
    # only 64 MiB — very large D needs the K-reduction variant (see TODO above).
    weight_bytes = sum(a.size * a.dtype.itemsize for a in inputs[1:])
    tile_bytes = 2 * tm * d_in_pad * 2 + 2 * tm * d_out_pad * 4
    temp_bytes = 4 * tm * max(h_pad, d_out_pad) * 4
    vmem_limit = int(min(max(weight_bytes + tile_bytes + temp_bytes + (4 << 20),
                             32 << 20), 100 << 20))

    flops = 2 * B_pad * (d_in_pad * h_pad + h_pad * d_out_pad
                         + (d_in_pad * d_out_pad if has_proj else 0))
    bytes_accessed = B_pad * d_in_pad * 2 + weight_bytes + B_pad * d_out_pad * 4
    cost = pl.CostEstimate(flops=flops, transcendentals=2 * B_pad,
                           bytes_accessed=bytes_accessed)

    out = pl.pallas_call(
        _make_kernel(hidden_true, out_units, has_proj),
        out_shape=jax.ShapeDtypeStruct((B_pad, d_out_pad), jnp.float32),
        grid_spec=pltpu.PrefetchScalarGridSpec(
            num_scalar_prefetch=0,
            grid=(B_pad // tm,),
            in_specs=in_specs,
            out_specs=out_spec,
        ),
        compiler_params=pltpu.CompilerParams(
            dimension_semantics=("parallel",),      # megacore on v7x, neutral elsewhere
            vmem_limit_bytes=vmem_limit),
        cost_estimate=cost,
    )(*inputs)

    if B_pad != B or d_out_pad != out_units:
        out = out[:B, :out_units]
    return out


# ----------------------------- pure-JAX reference -----------------------------
def _layernorm(x, gamma, beta):
    mean = jnp.mean(x, axis=-1, keepdims=True)
    var = jnp.mean((x - mean) * (x - mean), axis=-1, keepdims=True)
    return (x - mean) * jax.lax.rsqrt(var + _LN_EPS) * gamma + beta


def _reference(x, params, hidden, out_units):
    """f32 reference mirroring the PyTorch forward (un-padded widths)."""
    d_in = x.shape[1]
    w1 = params["w1"][:d_in, :hidden].astype(jnp.float32)
    b1 = params["ln1p"][0, :hidden]
    g1 = params["ln1p"][1, :hidden]
    be1 = params["ln1p"][2, :hidden]
    w2 = params["w2"][:hidden, :out_units].astype(jnp.float32)
    b2eff = params["ln2p"][0, :out_units]   # b2 (+ bu) — algebraically identical fold
    g2 = params["ln2p"][1, :out_units]
    be2 = params["ln2p"][2, :out_units]

    h = jnp.maximum(_layernorm(x @ w1 + b1, g1, be1), 0.0)
    y = h @ w2
    if "wu" in params:
        y = y + x @ params["wu"][:d_in, :out_units].astype(jnp.float32)
    else:
        y = y + x
    y = y + b2eff
    return jnp.maximum(_layernorm(y, g2, be2), 0.0)


if __name__ == "__main__":
    key = jax.random.PRNGKey(0)
    kx1, kp1, kp2, kx3, kp4, kx4 = jax.random.split(key, 6)

    # bf16 x / bf16 MXU operands are a deliberate precision deviation from the
    # pure-f32 PyTorch module -> loosened tolerance vs. the f32 reference.
    ATOL = RTOL = 3e-2

    # Case 1: output_units == input_units (identity residual), hidden 64 -> pad 128.
    B, D_IN = 8, 128
    x = jax.random.normal(kx1, (B, D_IN), jnp.float32)
    params, hid, dout = init_params(kp1, input_units=D_IN)
    out = residual_block(x, params, hidden_true=hid, out_units=dout)
    jax.block_until_ready(out)
    ref = _reference(x, params, hid, dout)
    assert out.shape == (B, dout)
    assert jnp.allclose(out, ref, atol=ATOL, rtol=RTOL)

    # Case 2: output_units != input_units -> updownsample Linear on the residual.
    D_OUT = 256
    params2, hid2, dout2 = init_params(kp2, input_units=D_IN, output_units=D_OUT)
    out2 = residual_block(x, params2, hidden_true=hid2, out_units=dout2)
    jax.block_until_ready(out2)
    ref2 = _reference(x, params2, hid2, dout2)
    assert out2.shape == (B, D_OUT)
    assert jnp.allclose(out2, ref2, atol=ATOL, rtol=RTOL)

    # Case 3: batch not a multiple of the tile -> batch tiling + >= 2 grid steps.
    B3 = 40
    x3 = jax.random.normal(kx3, (B3, D_IN), jnp.float32)
    out3 = residual_block(x3, params2, hidden_true=hid2, out_units=dout2, tile_m=16)
    jax.block_until_ready(out3)
    ref3 = _reference(x3, params2, hid2, dout2)
    assert out3.shape == (B3, D_OUT)
    assert jnp.allclose(out3, ref3, atol=ATOL, rtol=RTOL)

    # Case 4: dims not multiples of 128 (identity residual) -> exercises D_in /
    # hidden / D_out zero-padding and the mask-free true-width LayerNorm stats.
    B4, D4 = 24, 200
    x4 = jax.random.normal(kx4, (B4, D4), jnp.float32)
    params4, hid4, dout4 = init_params(kp4, input_units=D4)
    out4 = residual_block(x4, params4, hidden_true=hid4, out_units=dout4)
    jax.block_until_ready(out4)
    ref4 = _reference(x4, params4, hid4, dout4)
    assert out4.shape == (B4, D4)
    assert jnp.allclose(out4, ref4, atol=ATOL, rtol=RTOL)

    print("KERNEL_OK")
</pallas_src>

<mosaic_0001>
module attributes {stable_mosaic.version = 11 : i64} {
  func.func @kernel(%arg0: i32, %arg1: memref<8x128xbf16, #tpu.memory_space<vmem>>, %arg2: memref<128x128xbf16, #tpu.memory_space<vmem>>, %arg3: memref<3x128xf32, #tpu.memory_space<vmem>>, %arg4: memref<128x128xbf16, #tpu.memory_space<vmem>>, %arg5: memref<3x128xf32, #tpu.memory_space<vmem>>, %arg6: memref<8x128xf32, #tpu.memory_space<vmem>>) attributes {dimension_semantics = [#tpu.dimension_semantics<parallel>], iteration_bounds = array<i64: 1>, scalar_prefetch = 0 : i64, scratch_operands = 0 : i64, tpu.core_type = #tpu.core_type<tc>, window_params = [{transform_indices = @transform_0, window_bounds = array<i64: 8, 128>}, {pipeline_mode = #tpu.pipeline_mode<synchronous>, transform_indices = @transform_1, window_bounds = array<i64: 128, 128>}, {pipeline_mode = #tpu.pipeline_mode<synchronous>, transform_indices = @transform_2, window_bounds = array<i64: 3, 128>}, {pipeline_mode = #tpu.pipeline_mode<synchronous>, transform_indices = @transform_3, window_bounds = array<i64: 128, 128>}, {pipeline_mode = #tpu.pipeline_mode<synchronous>, transform_indices = @transform_4, window_bounds = array<i64: 3, 128>}, {transform_indices = @transform_5, window_bounds = array<i64: 8, 128>}]} {
    %c0 = arith.constant 0 : index
    %c0_0 = arith.constant 0 : index
    %0 = vector.load %arg1[%c0, %c0_0] : memref<8x128xbf16, #tpu.memory_space<vmem>>, vector<8x128xbf16>
    %c0_1 = arith.constant 0 : index
    %c0_2 = arith.constant 0 : index
    %1 = vector.load %arg2[%c0_1, %c0_2] : memref<128x128xbf16, #tpu.memory_space<vmem>>, vector<128x128xbf16>
    %cst = arith.constant dense<0.000000e+00> : vector<8x128xf32>
    %2 = tpu.matmul %0, %1, %cst {dimension_numbers = #tpu.dot_dimension_numbers<[1], [0], [0], [1], [0, 0, 1, 1], [], []>} : vector<8x128xbf16>, vector<128x128xbf16>, vector<8x128xf32> -> vector<8x128xf32>
    %c0_3 = arith.constant 0 : index
    %c0_4 = arith.constant 0 : index
    %3 = vector.load %arg3[%c0_3, %c0_4] : memref<3x128xf32, #tpu.memory_space<vmem>>, vector<1x128xf32>
    %4 = vector.broadcast %3 : vector<1x128xf32> to vector<8x128xf32>
    %5 = arith.addf %2, %4 : vector<8x128xf32>
    %cst_5 = arith.constant dense<0.000000e+00> : vector<8xf32>
    %6 = vector.multi_reduction <add>, %5, %cst_5 [1] : vector<8x128xf32> to vector<8xf32>
    %7 = vector.shape_cast %6 : vector<8xf32> to vector<8x1xf32>
    %cst_6 = arith.constant 1.562500e-02 : f32
    %8 = vector.broadcast %cst_6 : f32 to vector<8x1xf32>
    %9 = arith.mulf %7, %8 : vector<8x1xf32>
    %10 = arith.mulf %5, %5 : vector<8x128xf32>
    %cst_7 = arith.constant dense<0.000000e+00> : vector<8xf32>
    %11 = vector.multi_reduction <add>, %10, %cst_7 [1] : vector<8x128xf32> to vector<8xf32>
    %12 = vector.shape_cast %11 : vector<8xf32> to vector<8x1xf32>
    %cst_8 = arith.constant 1.562500e-02 : f32
    %13 = vector.broadcast %cst_8 : f32 to vector<8x1xf32>
    %14 = arith.mulf %12, %13 : vector<8x1xf32>
    %15 = arith.mulf %9, %9 : vector<8x1xf32>
    %16 = arith.subf %14, %15 : vector<8x1xf32>
    %17 = vector.broadcast %9 : vector<8x1xf32> to vector<8x128xf32>
    %18 = arith.subf %5, %17 : vector<8x128xf32>
    %cst_9 = arith.constant 9.99999974E-6 : f32
    %19 = vector.broadcast %cst_9 : f32 to vector<8x1xf32>
    %20 = arith.addf %16, %19 : vector<8x1xf32>
    %21 = math.rsqrt %20 : vector<8x1xf32>
    %22 = vector.broadcast %21 : vector<8x1xf32> to vector<8x128xf32>
    %23 = arith.mulf %18, %22 : vector<8x128xf32>
    %c1 = arith.constant 1 : index
    %c0_10 = arith.constant 0 : index
    %24 = vector.load %arg3[%c1, %c0_10] : memref<3x128xf32, #tpu.memory_space<vmem>>, vector<1x128xf32>
    %25 = vector.broadcast %24 : vector<1x128xf32> to vector<8x128xf32>
    %26 = arith.mulf %23, %25 : vector<8x128xf32>
    %c2 = arith.constant 2 : index
    %c0_11 = arith.constant 0 : index
    %27 = vector.load %arg3[%c2, %c0_11] : memref<3x128xf32, #tpu.memory_space<vmem>>, vector<1x128xf32>
    %28 = vector.broadcast %27 : vector<1x128xf32> to vector<8x128xf32>
    %29 = arith.addf %26, %28 : vector<8x128xf32>
    %cst_12 = arith.constant 0.000000e+00 : f32
    %30 = vector.broadcast %cst_12 : f32 to vector<8x128xf32>
    %31 = arith.maximumf %29, %30 : vector<8x128xf32>
    %32 = arith.truncf %31 : vector<8x128xf32> to vector<8x128xbf16>
    %c0_13 = arith.constant 0 : index
    %c0_14 = arith.constant 0 : index
    %33 = vector.load %arg4[%c0_13, %c0_14] : memref<128x128xbf16, #tpu.memory_space<vmem>>, vector<128x128xbf16>
    %cst_15 = arith.constant dense<0.000000e+00> : vector<8x128xf32>
    %34 = tpu.matmul %32, %33, %cst_15 {dimension_numbers = #tpu.dot_dimension_numbers<[1], [0], [0], [1], [0, 0, 1, 1], [], []>} : vector<8x128xbf16>, vector<128x128xbf16>, vector<8x128xf32> -> vector<8x128xf32>
    %c0_16 = arith.constant 0 : index
    %c0_17 = arith.constant 0 : index
    %35 = vector.load %arg1[%c0_16, %c0_17] : memref<8x128xbf16, #tpu.memory_space<vmem>>, vector<8x128xbf16>
    %36 = arith.extf %35 : vector<8x128xbf16> to vector<8x128xf32>
    %37 = arith.addf %34, %36 : vector<8x128xf32>
    %c0_18 = arith.constant 0 : index
    %c0_19 = arith.constant 0 : index
    %38 = vector.load %arg5[%c0_18, %c0_19] : memref<3x128xf32, #tpu.memory_space<vmem>>, vector<1x128xf32>
    %39 = vector.broadcast %38 : vector<1x128xf32> to vector<8x128xf32>
    %40 = arith.addf %37, %39 : vector<8x128xf32>
    %cst_20 = arith.constant dense<0.000000e+00> : vector<8xf32>
    %41 = vector.multi_reduction <add>, %40, %cst_20 [1] : vector<8x128xf32> to vector<8xf32>
    %42 = vector.shape_cast %41 : vector<8xf32> to vector<8x1xf32>
    %cst_21 = arith.constant 7.812500e-03 : f32
    %43 = vector.broadcast %cst_21 : f32 to vector<8x1xf32>
    %44 = arith.mulf %42, %43 : vector<8x1xf32>
    %45 = arith.mulf %40, %40 : vector<8x128xf32>
    %cst_22 = arith.constant dense<0.000000e+00> : vector<8xf32>
    %46 = vector.multi_reduction <add>, %45, %cst_22 [1] : vector<8x128xf32> to vector<8xf32>
    %47 = vector.shape_cast %46 : vector<8xf32> to vector<8x1xf32>
    %cst_23 = arith.constant 7.812500e-03 : f32
    %48 = vector.broadcast %cst_23 : f32 to vector<8x1xf32>
    %49 = arith.mulf %47, %48 : vector<8x1xf32>
    %50 = arith.mulf %44, %44 : vector<8x1xf32>
    %51 = arith.subf %49, %50 : vector<8x1xf32>
    %52 = vector.broadcast %44 : vector<8x1xf32> to vector<8x128xf32>
    %53 = arith.subf %40, %52 : vector<8x128xf32>
    %cst_24 = arith.constant 9.99999974E-6 : f32
    %54 = vector.broadcast %cst_24 : f32 to vector<8x1xf32>
    %55 = arith.addf %51, %54 : vector<8x1xf32>
    %56 = math.rsqrt %55 : vector<8x1xf32>
    %57 = vector.broadcast %56 : vector<8x1xf32> to vector<8x128xf32>
    %58 = arith.mulf %53, %57 : vector<8x128xf32>
    %c1_25 = arith.constant 1 : index
    %c0_26 = arith.constant 0 : index
    %59 = vector.load %arg5[%c1_25, %c0_26] : memref<3x128xf32, #tpu.memory_space<vmem>>, vector<1x128xf32>
    %60 = vector.broadcast %59 : vector<1x128xf32> to vector<8x128xf32>
    %61 = arith.mulf %58, %60 : vector<8x128xf32>
    %c2_27 = arith.constant 2 : index
    %c0_28 = arith.constant 0 : index
    %62 = vector.load %arg5[%c2_27, %c0_28] : memref<3x128xf32, #tpu.memory_space<vmem>>, vector<1x128xf32>
    %63 = vector.broadcast %62 : vector<1x128xf32> to vector<8x128xf32>
    %64 = arith.addf %61, %63 : vector<8x128xf32>
    %cst_29 = arith.constant 0.000000e+00 : f32
    %65 = vector.broadcast %cst_29 : f32 to vector<8x128xf32>
    %66 = arith.maximumf %64, %65 : vector<8x128xf32>
    %c0_30 = arith.constant 0 : index
    %c0_31 = arith.constant 0 : index
    %67 = vector.load %arg6[%c0_30, %c0_31] : memref<8x128xf32, #tpu.memory_space<vmem>>, vector<8x128xf32>
    tpu.vector_store %arg6[%c0_30, %c0_31], %66 {strides = array<i32>} : memref<8x128xf32, #tpu.memory_space<vmem>>, vector<8x128xf32>,
    return
  }
  func.func @transform_0(%arg0: i32) -> (i32, i32) {
    %c0_i32 = arith.constant 0 : i32
    %c0_i32_0 = arith.constant 0 : i32
    return %arg0, %c0_i32 : i32, i32
  }
  func.func @transform_1(%arg0: i32) -> (i32, i32) {
    %c0_i32 = arith.constant 0 : i32
    %c0_i32_0 = arith.constant 0 : i32
    %c0_i32_1 = arith.constant 0 : i32
    return %c0_i32, %c0_i32_0 : i32, i32
  }
  func.func @transform_2(%arg0: i32) -> (i32, i32) {
    %c0_i32 = arith.constant 0 : i32
    %c0_i32_0 = arith.constant 0 : i32
    %c0_i32_1 = arith.constant 0 : i32
    return %c0_i32, %c0_i32_0 : i32, i32
  }
  func.func @transform_3(%arg0: i32) -> (i32, i32) {
    %c0_i32 = arith.constant 0 : i32
    %c0_i32_0 = arith.constant 0 : i32
    %c0_i32_1 = arith.constant 0 : i32
    return %c0_i32, %c0_i32_0 : i32, i32
  }
  func.func @transform_4(%arg0: i32) -> (i32, i32) {
    %c0_i32 = arith.constant 0 : i32
    %c0_i32_0 = arith.constant 0 : i32
    %c0_i32_1 = arith.constant 0 : i32
    return %c0_i32, %c0_i32_0 : i32, i32
  }
  func.func @transform_5(%arg0: i32) -> (i32, i32) {
    %c0_i32 = arith.constant 0 : i32
    %c0_i32_0 = arith.constant 0 : i32
    return %arg0, %c0_i32 : i32, i32
  }
}

</mosaic_0001>

<llo_original>
// kernel: residual_block.1
$region0: #{residual_block.1}
  #allocation0 [shape = 'u32[]', space=smem, size = 0x4, offset = 0x4, fixed_abs, tag = 'smem constant byte address 0x4 - core index']
  #allocation1 [shape = 'u32[144,128]{1,0:T(1,128)}', space=vmem, size = 0x12000, scoped, tag = 'internal scratch']
  %s0 = inlined_call_operand.vmem [shape: bf16[8,128], index: 0, kind: input, shape index: {}]
  %s1 = inlined_call_operand.hbm [shape: bf16[128,128], index: 1, kind: input, shape index: {}]
  %s2 = inlined_call_operand.vmem [shape: f32[3,128], index: 2, kind: input, shape index: {}]
  %s3 = inlined_call_operand.hbm [shape: bf16[128,128], index: 3, kind: input, shape index: {}]
  %s4 = inlined_call_operand.vmem [shape: f32[3,128], index: 4, kind: input, shape index: {}]
  %s5 = inlined_call_operand.hbm [shape: f32[8,128], index: 5, kind: output, shape index: {}]
  %s6 = sld [smem:[#allocation0]]
  $region38: #{residual_block.1} parent=0
    _
  %s8 = ssub.s32 1, %s6
  %s9 = scalar_select 0, %s8, %s6
  $region1: #{residual_block.1} parent=0
    #allocation2 [shape = 'u8[32768]{0}', space=vmem, size = 0x8000, scoped, tag = 'input window, operand 1, single buffered']
    #allocation3 [shape = 's32[1]{0}', space=sflag, size = 0x4, scoped, tag = 'scoped memory for residual_block.1']
    #allocation4 [shape = 's32[1]{0}', space=sflag, size = 0x4, scoped, tag = 'scoped memory for residual_block.1']
    #allocation5 [shape = 'u8[32768]{0}', space=vmem, size = 0x8000, scoped, tag = 'input window, operand 3, single buffered']
    #allocation6 [shape = 's32[1]{0}', space=sflag, size = 0x4, scoped, tag = 'scoped memory for residual_block.1']
    #allocation7 [shape = 'u8[4096]{0}', space=vmem, size = 0x1000, scoped, tag = 'output window, operand 0, single buffered']
    %10 = vsyncpa [#allocation3], 0
    %11 = vsyncpa [#allocation6], 0
    %12 = vsyncpa [#allocation4], 0
    // Predicated region
    $region2: #{residual_block.1} parent=1 // pred_check
      _
    $region3: #{residual_block.1} parent=1 // pred_check_branch
      %14 = sbr.rel (0) target = $region5
    $region4: #{residual_block.1} parent=1 // pred_region
      _
    $region5: #{residual_block.1} parent=1 // pred_fallthru
      _
    // Predicated region
    $region6: #{residual_block.1} parent=1 // pred_check
      _
    $region7: #{residual_block.1} parent=1 // pred_check_branch
      %16 = sbr.rel (0) target = $region9
    $region8: #{residual_block.1} parent=1 // pred_region
      %s18 = ssub.s32 1024, 1024
      %19 = vsyncadd [#allocation3], %s18
      %s20 = sshll.u32 [#allocation2], 4
      %s21 = int_to_ptr.vmem [resolvable:$true] %s20
      %26 = dma.hbm_to_vmem [thread:$0]  %s1, 1024, %s21, [#allocation3], 64, 64, 4
    $region9: #{residual_block.1} parent=1 // pred_fallthru
      _
    // Predicated region
    $region10: #{residual_block.1} parent=1 // pred_check
      _
    $region11: #{residual_block.1} parent=1 // pred_check_branch
      %28 = sbr.rel (0) target = $region13
    $region12: #{residual_block.1} parent=1 // pred_region
      _
    $region13: #{residual_block.1} parent=1 // pred_fallthru
      _
    // Predicated region
    $region14: #{residual_block.1} parent=1 // pred_check
      _
    $region15: #{residual_block.1} parent=1 // pred_check_branch
      %30 = sbr.rel (0) target = $region17
    $region16: #{residual_block.1} parent=1 // pred_region
      %s32 = ssub.s32 1024, 1024
      %33 = vsyncadd [#allocation6], %s32
      %s34 = sshll.u32 [#allocation5], 4
      %s35 = int_to_ptr.vmem [resolvable:$true] %s34
      %40 = dma.hbm_to_vmem [thread:$0]  %s3, 1024, %s35, [#allocation6], 64, 64, 4
    $region17: #{residual_block.1} parent=1 // pred_fallthru
      _
    // Predicated region
    $region18: #{residual_block.1} parent=1 // pred_check
      _
    $region19: #{residual_block.1} parent=1 // pred_check_branch
      %42 = sbr.rel (0) target = $region21
    $region20: #{residual_block.1} parent=1 // pred_region
      _
    $region21: #{residual_block.1} parent=1 // pred_fallthru
      _
    // Predicated region
    $region22: #{residual_block.1} parent=1 // pred_check
      _
    $region23: #{residual_block.1} parent=1 // pred_check_branch
      %44 = sbr.rel (0) target = $region25
    $region24: #{residual_block.1} parent=1 // pred_region
      %45 = dma.done [#allocation3], 1024
    $region25: #{residual_block.1} parent=1 // pred_fallthru
      _
    // Predicated region
    $region26: #{residual_block.1} parent=1 // pred_check
      _
    $region27: #{residual_block.1} parent=1 // pred_check_branch
      %47 = sbr.rel (0) target = $region29
    $region28: #{residual_block.1} parent=1 // pred_region
      %48 = dma.done [#allocation6], 1024
    $region29: #{residual_block.1} parent=1 // pred_fallthru
      _
    %v50 = vld [vmem:[%s0] sm:$0xf]
    %v51 = vld [vmem:[#allocation2] sm:$0xf]
    %v52 = vld [vmem:[#allocation2 + $0x4] sm:$0xf]
    %v53 = vld [vmem:[#allocation2 + $0x8] sm:$0xf]
    %v54 = vld [vmem:[#allocation2 + $0xc] sm:$0xf]
    %v55 = vld [vmem:[#allocation2 + $0x10] sm:$0xf]
    %v56 = vld [vmem:[#allocation2 + $0x14] sm:$0xf]
    %v57 = vld [vmem:[#allocation2 + $0x18] sm:$0xf]
    %v58 = vld [vmem:[#allocation2 + $0x1c] sm:$0xf]
    %v59 = vld [vmem:[#allocation2 + $0x20] sm:$0xf]
    %v60 = vld [vmem:[#allocation2 + $0x24] sm:$0xf]
    %v61 = vld [vmem:[#allocation2 + $0x28] sm:$0xf]
    %v62 = vld [vmem:[#allocation2 + $0x2c] sm:$0xf]
    %v63 = vld [vmem:[#allocation2 + $0x30] sm:$0xf]
    %v64 = vld [vmem:[#allocation2 + $0x34] sm:$0xf]
    %v65 = vld [vmem:[#allocation2 + $0x38] sm:$0xf]
    %v66 = vld [vmem:[#allocation2 + $0x3c] sm:$0xf]
    %v67 = vld [vmem:[%s2] sm:$0x1]
    %v68 = vlaneseq
    %v69 = vshrl.u32 %v68, 7
    %v70 = vsub.s32 0, %v69
    %v71 = vrot.slane %v67, %v70
    %v88 = vunpack.c.l.b16 %v51
    %v89 = vunpack.c.l.b16 %v52
    %v90 = vunpack.c.l.b16 %v53
    %v91 = vunpack.c.l.b16 %v54
    %v92 = vunpack.c.l.b16 %v55
    %v93 = vunpack.c.l.b16 %v56
    %v94 = vunpack.c.l.b16 %v57
    %v95 = vunpack.c.l.b16 %v58
    %v96 = vunpack.c.l.b16 %v59
    %v97 = vunpack.c.l.b16 %v60
    %v98 = vunpack.c.l.b16 %v61
    %v99 = vunpack.c.l.b16 %v62
    %v100 = vunpack.c.l.b16 %v63
    %v101 = vunpack.c.l.b16 %v64
    %v102 = vunpack.c.l.b16 %v65
    %v103 = vunpack.c.l.b16 %v66
    %v104 = vpack.c.b16 %v89, %v88
    %v105 = vpack.c.b16 %v91, %v90
    %v106 = vpack.c.b16 %v93, %v92
    %v107 = vpack.c.b16 %v95, %v94
    %v108 = vpack.c.b16 %v97, %v96
    %v109 = vpack.c.b16 %v99, %v98
    %v110 = vpack.c.b16 %v101, %v100
    %v111 = vpack.c.b16 %v103, %v102
    %120 = vmatprep.subr.bf16.mxu0 0
    %121 = vmatpush1.bf16.msra.mxu0 %v104
    %122 = vmatprep.subr.bf16.mxu0 0
    %123 = vmatpush1.bf16.msra.mxu0 %v105
    %124 = vmatprep.subr.bf16.mxu0 0
    %125 = vmatpush1.bf16.msra.mxu0 %v106
    %126 = vmatprep.subr.bf16.mxu0 0
    %127 = vmatpush1.bf16.msra.mxu0 %v107
    %128 = vmatprep.subr.bf16.mxu0 0
    %129 = vmatpush1.bf16.msra.mxu0 %v108
    %130 = vmatprep.subr.bf16.mxu0 0
    %131 = vmatpush1.bf16.msra.mxu0 %v109
    %132 = vmatprep.subr.bf16.mxu0 0
    %133 = vmatpush1.bf16.msra.mxu0 %v110
    %134 = vmatprep.subr.bf16.mxu0 0
    %135 = vmatpush1.bf16.msra.mxu0 %v111
    %136 = vmatprep.subr.bf16.mxu0 0
    %137 = vmatpush1.bf16.msra.mxu0 0
    %138 = vmatprep.subr.bf16.mxu0 0
    %139 = vmatpush1.bf16.msra.mxu0 0
    %140 = vmatprep.subr.bf16.mxu0 0
    %141 = vmatpush1.bf16.msra.mxu0 0
    %142 = vmatprep.subr.bf16.mxu0 0
    %143 = vmatpush1.bf16.msra.mxu0 0
    %144 = vmatprep.subr.bf16.mxu0 0
    %145 = vmatpush1.bf16.msra.mxu0 0
    %146 = vmatprep.subr.bf16.mxu0 0
    %147 = vmatpush1.bf16.msra.mxu0 0
    %148 = vmatprep.subr.bf16.mxu0 0
    %149 = vmatpush1.bf16.msra.mxu0 0
    %150 = vmatprep.subr.bf16.mxu0 0
    %151 = vmatpush1.bf16.msra.mxu0 0
    %152 = vmatprep.mubr.bf16.mxu0 0
    %153 = vmatmul.mubr.bf16.gmra.mrb[0].mxu0 %v50
    %v154 = vpop.f32.mrb[0].mxu0
    %v155 = vadd.f32 %v71, %v154
    %v156 = vpop.f32.mrb[0].mxu0
    %v157 = vpop.f32.mrb[0].mxu0
    %v158 = vpop.f32.mrb[0].mxu0
    %159 = vdwg.mxu0
    %160 = vadd.xlane.f32.xlu0 %v155
    %v161 = vpop.xlane.xlu0 %160
    %v162 = vmul.f32 %v161, 0.015625
    %v163 = vmul.f32 %v155, %v155
    %164 = vadd.xlane.f32.xlu0 %v163
    %v165 = vpop.xlane.xlu0 %164
    %v166 = vmul.f32 %v165, 0.015625
    %v167 = vmul.f32 %v162, %v162
    %v168 = vsub.f32 %v166, %v167
    %v169 = vsub.f32 %v155, %v162
    %v170 = vadd.f32 %v168, 1e-05
    %v171 = vrsqrt.pop %v170
    %v172 = vmul.f32 %v169, %v171
    %v173 = vld [vmem:[%s2 + $0x1] sm:$0x1]
    %v174 = vlaneseq
    %v175 = vshrl.u32 %v174, 7
    %v176 = vsub.s32 0, %v175
    %v177 = vrot.slane %v173, %v176
    %v178 = vmul.f32 %v172, %v177
    %v179 = vld [vmem:[%s2 + $0x2] sm:$0x1]
    %v180 = vlaneseq
    %v181 = vshrl.u32 %v180, 7
    %v182 = vsub.s32 0, %v181
    %v183 = vrot.slane %v179, %v182
    %v184 = vadd.f32 %v178, %v183
    %v185 = vmax.f32 %v184, 0.0
    %v186 = vpack.c.bf16 %v185, %v185
    %v187 = vld [vmem:[#allocation5] sm:$0xf]
    %v188 = vld [vmem:[#allocation5 + $0x4] sm:$0xf]
    %v189 = vld [vmem:[#allocation5 + $0x8] sm:$0xf]
    %v190 = vld [vmem:[#allocation5 + $0xc] sm:$0xf]
    %v191 = vld [vmem:[#allocation5 + $0x10] sm:$0xf]
    %v192 = vld [vmem:[#allocation5 + $0x14] sm:$0xf]
    %v193 = vld [vmem:[#allocation5 + $0x18] sm:$0xf]
    %v194 = vld [vmem:[#allocation5 + $0x1c] sm:$0xf]
    %v195 = vld [vmem:[#allocation5 + $0x20] sm:$0xf]
    %v196 = vld [vmem:[#allocation5 + $0x24] sm:$0xf]
    %v197 = vld [vmem:[#allocation5 + $0x28] sm:$0xf]
    %v198 = vld [vmem:[#allocation5 + $0x2c] sm:$0xf]
    %v199 = vld [vmem:[#allocation5 + $0x30] sm:$0xf]
    %v200 = vld [vmem:[#allocation5 + $0x34] sm:$0xf]
    %v201 = vld [vmem:[#allocation5 + $0x38] sm:$0xf]
    %v202 = vld [vmem:[#allocation5 + $0x3c] sm:$0xf]
    %v203 = vunpack.c.l.bf16 %v50
    %v220 = vunpack.c.l.b16 %v187
    %v221 = vunpack.c.l.b16 %v188
    %v222 = vunpack.c.l.b16 %v189
    %v223 = vunpack.c.l.b16 %v190
    %v224 = vunpack.c.l.b16 %v191
    %v225 = vunpack.c.l.b16 %v192
    %v226 = vunpack.c.l.b16 %v193
    %v227 = vunpack.c.l.b16 %v194
    %v228 = vunpack.c.l.b16 %v195
    %v229 = vunpack.c.l.b16 %v196
    %v230 = vunpack.c.l.b16 %v197
    %v231 = vunpack.c.l.b16 %v198
    %v232 = vunpack.c.l.b16 %v199
    %v233 = vunpack.c.l.b16 %v200
    %v234 = vunpack.c.l.b16 %v201
    %v235 = vunpack.c.l.b16 %v202
    %v236 = vpack.c.b16 %v221, %v220
    %v237 = vpack.c.b16 %v223, %v222
    %v238 = vpack.c.b16 %v225, %v224
    %v239 = vpack.c.b16 %v227, %v226
    %v240 = vpack.c.b16 %v229, %v228
    %v241 = vpack.c.b16 %v231, %v230
    %v242 = vpack.c.b16 %v233, %v232
    %v243 = vpack.c.b16 %v235, %v234
    %252 = vmatprep.subr.bf16.mxu0 0
    %253 = vmatpush1.bf16.msra.mxu0 %v236
    %254 = vmatprep.subr.bf16.mxu0 0
    %255 = vmatpush1.bf16.msra.mxu0 %v237
    %256 = vmatprep.subr.bf16.mxu0 0
    %257 = vmatpush1.bf16.msra.mxu0 %v238
    %258 = vmatprep.subr.bf16.mxu0 0
    %259 = vmatpush1.bf16.msra.mxu0 %v239
    %260 = vmatprep.subr.bf16.mxu0 0
    %261 = vmatpush1.bf16.msra.mxu0 %v240
    %262 = vmatprep.subr.bf16.mxu0 0
    %263 = vmatpush1.bf16.msra.mxu0 %v241
    %264 = vmatprep.subr.bf16.mxu0 0
    %265 = vmatpush1.bf16.msra.mxu0 %v242
    %266 = vmatprep.subr.bf16.mxu0 0
    %267 = vmatpush1.bf16.msra.mxu0 %v243
    %268 = vmatprep.subr.bf16.mxu0 0
    %269 = vmatpush1.bf16.msra.mxu0 0
    %270 = vmatprep.subr.bf16.mxu0 0
    %271 = vmatpush1.bf16.msra.mxu0 0
    %272 = vmatprep.subr.bf16.mxu0 0
    %273 = vmatpush1.bf16.msra.mxu0 0
    %274 = vmatprep.subr.bf16.mxu0 0
    %275 = vmatpush1.bf16.msra.mxu0 0
    %276 = vmatprep.subr.bf16.mxu0 0
    %277 = vmatpush1.bf16.msra.mxu0 0
    %278 = vmatprep.subr.bf16.mxu0 0
    %279 = vmatpush1.bf16.msra.mxu0 0
    %280 = vmatprep.subr.bf16.mxu0 0
    %281 = vmatpush1.bf16.msra.mxu0 0
    %282 = vmatprep.subr.bf16.mxu0 0
    %283 = vmatpush1.bf16.msra.mxu0 0
    %284 = vmatprep.mubr.bf16.mxu0 0
    %285 = vmatmul.mubr.bf16.gmra.mrb[0].mxu0 %v186
    %v286 = vpop.f32.mrb[0].mxu0
    %v287 = vadd.f32 %v203, %v286
    %v288 = vpop.f32.mrb[0].mxu0
    %v289 = vpop.f32.mrb[0].mxu0
    %v290 = vpop.f32.mrb[0].mxu0
    %291 = vdwg.mxu0
    %v292 = vld [vmem:[%s4] sm:$0x1]
    %v293 = vlaneseq
    %v294 = vshrl.u32 %v293, 7
    %v295 = vsub.s32 0, %v294
    %v296 = vrot.slane %v292, %v295
    %v297 = vadd.f32 %v287, %v296
    %298 = vadd.xlane.f32.xlu0 %v297
    %v299 = vpop.xlane.xlu0 %298
    %v300 = vmul.f32 %v299, 0.0078125
    %v301 = vmul.f32 %v297, %v297
    %302 = vadd.xlane.f32.xlu0 %v301
    %v303 = vpop.xlane.xlu0 %302
    %v304 = vmul.f32 %v303, 0.0078125
    %v305 = vmul.f32 %v300, %v300
    %v306 = vsub.f32 %v304, %v305
    %v307 = vsub.f32 %v297, %v300
    %v308 = vadd.f32 %v306, 1e-05
    %v309 = vrsqrt.pop %v308
    %v310 = vmul.f32 %v307, %v309
    %v311 = vld [vmem:[%s4 + $0x1] sm:$0x1]
    %v312 = vlaneseq
    %v313 = vshrl.u32 %v312, 7
    %v314 = vsub.s32 0, %v313
    %v315 = vrot.slane %v311, %v314
    %v316 = vmul.f32 %v310, %v315
    %v317 = vld [vmem:[%s4 + $0x2] sm:$0x1]
    %v318 = vlaneseq
    %v319 = vshrl.u32 %v318, 7
    %v320 = vsub.s32 0, %v319
    %v321 = vrot.slane %v317, %v320
    %v322 = vadd.f32 %v316, %v321
    %v323 = vmax.f32 %v322, 0.0
    %324 = vst [vmem:[#allocation7] sm:$0xff] %v323
    // Predicated region
    $region30: #{residual_block.1} parent=1 // pred_check
      _
    $region31: #{residual_block.1} parent=1 // pred_check_branch
      %326 = sbr.rel (0) target = $region33
    $region32: #{residual_block.1} parent=1 // pred_region
      %s328 = ssub.s32 128, 128
      %329 = vsyncadd [#allocation4], %s328
      %s331 = sshll.u32 [#allocation7], 4
      %s332 = int_to_ptr.vmem [resolvable:$true] %s331
      %334 = dma.vmem_to_hbm [thread:$0]  %s332, 128, %s5, [#allocation4]
    $region33: #{residual_block.1} parent=1 // pred_fallthru
      _
    // Predicated region
    $region34: #{residual_block.1} parent=1 // pred_check
      _
    $region35: #{residual_block.1} parent=1 // pred_check_branch
      %336 = sbr.rel (0) target = $region37
    $region36: #{residual_block.1} parent=1 // pred_region
      %337 = dma.done [#allocation4], 128
    $region37: #{residual_block.1} parent=1 // pred_fallthru
      _
    %338 = vsyncpa [#allocation3], 1
    %339 = vsyncpa [#allocation6], 1
    %340 = vsyncpa [#allocation4], 1

</llo_original>
